<compile_context>
chip_gen: v7x
topology: tpu7x:2x2x1
jax: 0.10.0
libtpu: 0.0.40
codegen_flags: <defaults>
</compile_context>

<pallas_src>
import functools

import jax
import jax.numpy as jnp
from jax.experimental import pallas as pl
from jax.experimental.pallas import tpu as pltpu

_NEG = -1e30  # effectively -inf for masking, but finite (no inf/NaN edge cases)


def _round_up(x, m):
    return ((x + m - 1) // m) * m


def _fused_kernel(ids_ref, tab_ref, w_ref, b_ref, m_ref, o_ref, col_ref,
                  *, K_max, Lp, Lh, TB, Vp):
    """Embedding gather + conv(all K) + masked max-over-time + bias + ReLU.

    ids_ref: (TB, Lp, 1)      int32  token ids for this batch block
    tab_ref: (Vp, D)          bf16   embedding table (vocab zero-padded)
    w_ref:   (K_max*D, Cp)    bf16   taps x channels fused conv weight (zero padded)
    b_ref:   (1, Cp)          f32    fused bias
    m_ref:   (Lp-Lh, Cp)      f32    additive validity mask, tail rows only
    o_ref:   (TB, Cp)         f32    pooled features (lane-dense slab)
    col_ref: (TB*Lp, K_max*D) bf16   VMEM scratch holding the im2col block
    """
    D = tab_ref.shape[-1]
    Cp = w_ref.shape[-1]
    M = TB * Lp

    # ---- embedding lookup fused in-kernel: one-hot(ids) @ table on the MXU ----
    ids = ids_ref[...]                                              # (TB, Lp, 1)
    iota_v = jax.lax.broadcasted_iota(jnp.int32, (TB, Lp, Vp), 2)
    one_hot = (ids == iota_v).astype(jnp.float32)                   # (TB, Lp, Vp)
    one_hot = one_hot.reshape(M, Vp).astype(jnp.bfloat16)           # Lp % 8 == 0
    # exact bf16 table values selected by the one-hot, accumulated in f32
    e2 = jnp.dot(one_hot, tab_ref[...], preferred_element_type=jnp.float32)

    # ---- im2col: K_max row-rolled copies packed along lanes into VMEM scratch.
    # Wrapped rows only reach masked tail time positions / zero-padded taps.
    col_ref[:, 0:D] = e2.astype(jnp.bfloat16)
    for k in range(1, K_max):                                       # static unroll
        rolled = pltpu.roll(e2, M - k, axis=0)   # == jnp.roll(e2, -k, axis=0)
        col_ref[:, k * D:(k + 1) * D] = rolled.astype(jnp.bfloat16)

    # ---- every tap of every kernel size in ONE deep-contraction MXU pass ----
    acc = jnp.dot(col_ref[...], w_ref[...],
                  preferred_element_type=jnp.float32)                # (M, Cp)
    acc = acc.reshape(TB, Lp, Cp)

    # ---- max over time: unmasked head (always valid) + masked tail ----
    tail = acc[:, Lh:, :] + m_ref[...]           # mask touches only Lp-Lh rows
    pooled = jnp.max(tail, axis=1)                                   # (TB, Cp)
    if Lh > 0:
        pooled = jnp.maximum(pooled, jnp.max(acc[:, :Lh, :], axis=1))

    # bias + ReLU after the max (exact: ReLU monotone, bias time-invariant)
    o_ref[...] = jnp.maximum(pooled + b_ref[...], 0.0)


def fused_char_cnn(x, embed, ws, bs, *, block_b=None):
    """x: (B, L) int ids; embed: (V, D); ws: list of (K_i, D, Co_i); bs: list of (Co_i,).

    Returns (B, sum_i Co_i) f32 == concat_i[ max_t relu( conv_{K_i}(embed[x]) ) ].
    """
    B, L = x.shape
    V, D = embed.shape
    Ks = [int(w.shape[0]) for w in ws]
    Cos = [int(w.shape[-1]) for w in ws]
    K_max = max(Ks)
    if L < K_max:
        raise ValueError(f"sequence length {L} < largest kernel size {K_max}")
    Co_total = sum(Cos)

    # ---- padded static sizes ------------------------------------------------
    Cp = max(128, _round_up(Co_total, 128))      # lane-dense channel slab
    Vp = _round_up(max(V, 16), 16)               # padded vocab (one-hot width)
    Lp = _round_up(L, 8)                         # time padded to f32 sublane tile
    KD = K_max * D                               # fused contraction depth
    # head rows valid for every real channel group, aligned down to 8 sublanes
    Lh = max(0, min(((L - K_max + 1) // 8) * 8, Lp - 8))
    Lt = Lp - Lh

    # ---- fused / padded weights, bias, table, tail mask ----------------------
    w_full = jnp.zeros((K_max, D, Cp), jnp.float32)
    b_full = jnp.zeros((1, Cp), jnp.float32)
    valid = jnp.zeros((Cp,), jnp.int32)          # valid output time steps / channel
    col = 0
    for K, Co, w, b in zip(Ks, Cos, ws, bs):
        w_full = w_full.at[:K, :, col:col + Co].set(w.astype(jnp.float32))
        b_full = b_full.at[0, col:col + Co].set(b.astype(jnp.float32))
        valid = valid.at[col:col + Co].set(L - K + 1)
        col += Co
    w_flat = w_full.reshape(KD, Cp).astype(jnp.bfloat16)  # row k*D+d <-> tap k, dim d
    tab = jnp.zeros((Vp, D), jnp.float32).at[:V].set(embed.astype(jnp.float32))
    tab = tab.astype(jnp.bfloat16)
    t_idx = Lh + jnp.arange(Lt, dtype=jnp.int32)[:, None]            # (Lt, 1)
    tail_mask = jnp.where(t_idx < valid[None, :], 0.0, _NEG).astype(jnp.float32)

    # ---- ids: pad L->Lp (pad token 0 is masked for every group), add unit lane
    ids = x.astype(jnp.int32)
    if Lp != L:
        ids = jnp.pad(ids, ((0, 0), (0, Lp - L)))
    ids = ids[:, :, None]                                             # (B, Lp, 1)

    # ---- generation-aware batch tile / VMEM budget ---------------------------
    try:
        vmem_cap = int(getattr(pltpu.get_tpu_info(), "vmem_capacity_bytes",
                               64 * 1024 * 1024))
    except Exception:
        vmem_cap = 64 * 1024 * 1024
    # v5e/v6e: 128 MiB physical -> 64 MiB limit; v7x: 64 MiB/TC -> 32 MiB limit.
    vmem_limit = int(min(max(vmem_cap // 2, 16 * 1024 * 1024), 64 * 1024 * 1024))
    budget = (vmem_limit * 3) // 4               # sizing headroom under the limit

    if block_b is None:
        KDp = _round_up(KD, 128)
        per_row = (
            2 * Lp * 128 * 4        # ids block, (Lp,1)->(Lp,128) VMEM padding, x2 buffers
            + Lp * Vp * 6           # one-hot (f32 + bf16)
            + 2 * Lp * D * 4        # e2 (f32) + one rolled copy
            + Lp * KDp * 2          # im2col scratch (bf16, lanes padded)
            + Lp * Cp * 4           # f32 conv accumulator
            + Lt * Cp * 8           # masked-tail temporaries
            + 3 * Cp * 4            # pooled row + double-buffered output row
        )
        per_row = (per_row * 3) // 2 + 1         # regalloc / relayout headroom
        block_b = max(8, min(budget // per_row, 1024))
        if B >= 16:                              # keep >= 2 grid steps
            block_b = min(block_b, _round_up(B // 2, 8))
    block_b = max(8, min((block_b // 8) * 8, _round_up(B, 8)))
    n_steps = -(-B // block_b)
    if n_steps > 1 and n_steps % 2:              # even grid: v7x megacore balance
        n_steps += 1
    Bp = n_steps * block_b
    if Bp != B:
        ids = jnp.pad(ids, ((0, Bp - B), (0, 0), (0, 0)))

    kernel = functools.partial(_fused_kernel, K_max=K_max, Lp=Lp, Lh=Lh,
                               TB=block_b, Vp=Vp)
    flops = 2 * Bp * Lp * (Vp * D + KD * Cp)
    bytes_accessed = (Bp * Lp * 4 + Vp * D * 2 + KD * Cp * 2
                      + (1 + Lt) * Cp * 4 + Bp * Cp * 4)

    out = pl.pallas_call(
        kernel,
        out_shape=jax.ShapeDtypeStruct((Bp, Cp), jnp.float32),
        grid_spec=pltpu.PrefetchScalarGridSpec(
            num_scalar_prefetch=0,
            grid=(n_steps,),
            in_specs=[
                pl.BlockSpec((block_b, Lp, 1), lambda i: (i, 0, 0)),   # token ids
                pl.BlockSpec((Vp, D), lambda i: (0, 0)),               # embed table
                pl.BlockSpec((KD, Cp), lambda i: (0, 0)),              # fused weights
                pl.BlockSpec((1, Cp), lambda i: (0, 0)),               # fused bias
                pl.BlockSpec((Lt, Cp), lambda i: (0, 0)),              # tail mask
            ],
            out_specs=pl.BlockSpec((block_b, Cp), lambda i: (i, 0)),   # lane-dense
            scratch_shapes=[pltpu.VMEM((block_b * Lp, KD), jnp.bfloat16)],
        ),
        compiler_params=pltpu.CompilerParams(
            dimension_semantics=("parallel",),
            vmem_limit_bytes=vmem_limit),
        cost_estimate=pl.CostEstimate(flops=flops, transcendentals=0,
                                      bytes_accessed=bytes_accessed),
    )(ids, tab, w_flat, b_full, tail_mask)
    return out[:B, :Co_total]


def init_params(key, vocab_size, embed_dim, kernel_num, kernel_sizes):
    keys = jax.random.split(key, 1 + 2 * len(kernel_sizes))
    embed = 0.1 * jax.random.normal(keys[0], (vocab_size, embed_dim), jnp.float32)
    convs = []
    for i, K in enumerate(kernel_sizes):
        w = 0.1 * jax.random.normal(keys[1 + 2 * i],
                                    (K, embed_dim, kernel_num), jnp.float32)
        b = 0.1 * jax.random.normal(keys[2 + 2 * i], (kernel_num,), jnp.float32)
        convs.append((w, b))
    return embed, convs


def char_cnn_forward(params, x):
    """x: (B, L) int32 token ids -> (B, kernel_num * len(kernel_sizes)) f32."""
    embed, convs = params
    ws = [w for (w, _) in convs]
    bs = [b for (_, b) in convs]
    out = fused_char_cnn(x, embed, ws, bs)     # embed+conv+relu+maxpool+concat fused
    # nn.Dropout is the identity in eval mode; reproduced as identity here.
    # TODO(synk): training-mode dropout (random mask + 1/(1-p) scale) not implemented.
    return out


def _reference(params, x):
    """Pure-JAX reference (embeddings/weights rounded to bf16 like the kernel)."""
    embed, convs = params
    e = jnp.take(embed.astype(jnp.bfloat16).astype(jnp.float32), x, axis=0)
    L = e.shape[1]
    feats = []
    for (w, b) in convs:
        K = w.shape[0]
        w32 = w.astype(jnp.bfloat16).astype(jnp.float32)
        Lo = L - K + 1
        conv = sum(jnp.einsum("bld,dc->blc", e[:, k:k + Lo, :], w32[k])
                   for k in range(K))
        conv = jnp.maximum(conv + b[None, None, :], 0.0)
        feats.append(jnp.max(conv, axis=1))
    return jnp.concatenate(feats, axis=1)


if __name__ == "__main__":
    vocab_size, embed_dim, kernel_num = 20, 32, 8
    kernel_sizes = (3, 4, 5)
    B, L = 16, 16

    key = jax.random.PRNGKey(0)
    pkey, xkey = jax.random.split(key)
    params = init_params(pkey, vocab_size, embed_dim, kernel_num, kernel_sizes)
    x = jax.random.randint(xkey, (B, L), 0, vocab_size, dtype=jnp.int32)

    out = jax.block_until_ready(char_cnn_forward(params, x))
    assert out.shape == (B, kernel_num * len(kernel_sizes)), out.shape
    assert out.dtype == jnp.float32

    ref = jax.block_until_ready(_reference(params, x))
    assert jnp.allclose(out, ref, atol=2e-2, rtol=2e-2), \
        float(jnp.max(jnp.abs(out - ref)))

    print("KERNEL_OK")
</pallas_src>

<mosaic_0001>
module attributes {stable_mosaic.version = 11 : i64} {
  func.func @_fused_kernel(%arg0: i32, %arg1: memref<8x16x1xi32, #tpu.memory_space<vmem>>, %arg2: memref<32x32xbf16, #tpu.memory_space<vmem>>, %arg3: memref<160x128xbf16, #tpu.memory_space<vmem>>, %arg4: memref<1x128xf32, #tpu.memory_space<vmem>>, %arg5: memref<8x128xf32, #tpu.memory_space<vmem>>, %arg6: memref<8x128xf32, #tpu.memory_space<vmem>>, %arg7: memref<128x160xbf16, #tpu.memory_space<vmem>>) attributes {dimension_semantics = [#tpu.dimension_semantics<parallel>], iteration_bounds = array<i64: 2>, scalar_prefetch = 0 : i64, scratch_operands = 1 : i64, tpu.core_type = #tpu.core_type<tc>, window_params = [{transform_indices = @transform_0, window_bounds = array<i64: 8, 16, 1>}, {pipeline_mode = #tpu.pipeline_mode<synchronous>, transform_indices = @transform_1, window_bounds = array<i64: 32, 32>}, {pipeline_mode = #tpu.pipeline_mode<synchronous>, transform_indices = @transform_2, window_bounds = array<i64: 160, 128>}, {pipeline_mode = #tpu.pipeline_mode<synchronous>, transform_indices = @transform_3, window_bounds = array<i64: 1, 128>}, {pipeline_mode = #tpu.pipeline_mode<synchronous>, transform_indices = @transform_4, window_bounds = array<i64: 8, 128>}, {transform_indices = @transform_5, window_bounds = array<i64: 8, 128>}]} {
    %c0 = arith.constant 0 : index
    %c0_0 = arith.constant 0 : index
    %c0_1 = arith.constant 0 : index
    %0 = vector.load %arg1[%c0, %c0_0, %c0_1] : memref<8x16x1xi32, #tpu.memory_space<vmem>>, vector<8x16x1xi32>
    %1 = tpu.iota {dimensions = array<i32: 2>} : vector<8x16x32xi32>
    %2 = vector.broadcast %0 : vector<8x16x1xi32> to vector<8x16x32xi32>
    %3 = arith.cmpi eq, %2, %1 : vector<8x16x32xi32>
    %4 = arith.extui %3 : vector<8x16x32xi1> to vector<8x16x32xi32>
    %5 = arith.sitofp %4 : vector<8x16x32xi32> to vector<8x16x32xf32>
    %6 = vector.shape_cast %5 : vector<8x16x32xf32> to vector<128x32xf32>
    %7 = arith.truncf %6 : vector<128x32xf32> to vector<128x32xbf16>
    %c0_2 = arith.constant 0 : index
    %c0_3 = arith.constant 0 : index
    %8 = vector.load %arg2[%c0_2, %c0_3] : memref<32x32xbf16, #tpu.memory_space<vmem>>, vector<32x32xbf16>
    %cst = arith.constant dense<0.000000e+00> : vector<128x32xf32>
    %9 = tpu.matmul %7, %8, %cst {dimension_numbers = #tpu.dot_dimension_numbers<[1], [0], [0], [1], [0, 0, 1, 1], [], []>} : vector<128x32xbf16>, vector<32x32xbf16>, vector<128x32xf32> -> vector<128x32xf32>
    %10 = arith.truncf %9 : vector<128x32xf32> to vector<128x32xbf16>
    %c0_4 = arith.constant 0 : index
    %c0_5 = arith.constant 0 : index
    %11 = vector.load %arg7[%c0_4, %c0_5] : memref<128x160xbf16, #tpu.memory_space<vmem>>, vector<128x32xbf16>
    tpu.vector_store %arg7[%c0_4, %c0_5], %10 {strides = array<i32>} : memref<128x160xbf16, #tpu.memory_space<vmem>>, vector<128x32xbf16>,
    %c127_i32 = arith.constant 127 : i32
    %12 = tpu.dynamic_rotate %9 by %c127_i32 dim 0 : vector<128x32xf32>, i32 -> vector<128x32xf32>
    %13 = arith.truncf %12 : vector<128x32xf32> to vector<128x32xbf16>
    %c0_6 = arith.constant 0 : index
    %c32 = arith.constant 32 : index
    %14 = vector.load %arg7[%c0_6, %c32] : memref<128x160xbf16, #tpu.memory_space<vmem>>, vector<128x32xbf16>
    tpu.vector_store %arg7[%c0_6, %c32], %13 {strides = array<i32>} : memref<128x160xbf16, #tpu.memory_space<vmem>>, vector<128x32xbf16>,
    %c126_i32 = arith.constant 126 : i32
    %15 = tpu.dynamic_rotate %9 by %c126_i32 dim 0 : vector<128x32xf32>, i32 -> vector<128x32xf32>
    %16 = arith.truncf %15 : vector<128x32xf32> to vector<128x32xbf16>
    %c0_7 = arith.constant 0 : index
    %c64 = arith.constant 64 : index
    %17 = vector.load %arg7[%c0_7, %c64] : memref<128x160xbf16, #tpu.memory_space<vmem>>, vector<128x32xbf16>
    tpu.vector_store %arg7[%c0_7, %c64], %16 {strides = array<i32>} : memref<128x160xbf16, #tpu.memory_space<vmem>>, vector<128x32xbf16>,
    %c125_i32 = arith.constant 125 : i32
    %18 = tpu.dynamic_rotate %9 by %c125_i32 dim 0 : vector<128x32xf32>, i32 -> vector<128x32xf32>
    %19 = arith.truncf %18 : vector<128x32xf32> to vector<128x32xbf16>
    %c0_8 = arith.constant 0 : index
    %c96 = arith.constant 96 : index
    %20 = vector.load %arg7[%c0_8, %c96] : memref<128x160xbf16, #tpu.memory_space<vmem>>, vector<128x32xbf16>
    tpu.vector_store %arg7[%c0_8, %c96], %19 {strides = array<i32>} : memref<128x160xbf16, #tpu.memory_space<vmem>>, vector<128x32xbf16>,
    %c124_i32 = arith.constant 124 : i32
    %21 = tpu.dynamic_rotate %9 by %c124_i32 dim 0 : vector<128x32xf32>, i32 -> vector<128x32xf32>
    %22 = arith.truncf %21 : vector<128x32xf32> to vector<128x32xbf16>
    %c0_9 = arith.constant 0 : index
    %c128 = arith.constant 128 : index
    %23 = vector.load %arg7[%c0_9, %c128] : memref<128x160xbf16, #tpu.memory_space<vmem>>, vector<128x32xbf16>
    tpu.vector_store %arg7[%c0_9, %c128], %22 {strides = array<i32>} : memref<128x160xbf16, #tpu.memory_space<vmem>>, vector<128x32xbf16>,
    %c0_10 = arith.constant 0 : index
    %c0_11 = arith.constant 0 : index
    %24 = vector.load %arg7[%c0_10, %c0_11] : memref<128x160xbf16, #tpu.memory_space<vmem>>, vector<128x160xbf16>
    %c0_12 = arith.constant 0 : index
    %c0_13 = arith.constant 0 : index
    %25 = vector.load %arg3[%c0_12, %c0_13] : memref<160x128xbf16, #tpu.memory_space<vmem>>, vector<160x128xbf16>
    %cst_14 = arith.constant dense<0.000000e+00> : vector<128x128xf32>
    %26 = tpu.matmul %24, %25, %cst_14 {dimension_numbers = #tpu.dot_dimension_numbers<[1], [0], [0], [1], [0, 0, 1, 1], [], []>} : vector<128x160xbf16>, vector<160x128xbf16>, vector<128x128xf32> -> vector<128x128xf32>
    %27 = vector.shape_cast %26 : vector<128x128xf32> to vector<8x16x128xf32>
    %28 = vector.extract_strided_slice %27 {offsets = [0, 8, 0], sizes = [8, 8, 128], strides = [1, 1, 1]} : vector<8x16x128xf32> to vector<8x8x128xf32>
    %c0_15 = arith.constant 0 : index
    %c0_16 = arith.constant 0 : index
    %29 = vector.load %arg5[%c0_15, %c0_16] : memref<8x128xf32, #tpu.memory_space<vmem>>, vector<8x128xf32>
    %30 = vector.shape_cast %29 : vector<8x128xf32> to vector<1x8x128xf32>
    %31 = vector.broadcast %30 : vector<1x8x128xf32> to vector<8x8x128xf32>
    %32 = arith.addf %28, %31 : vector<8x8x128xf32>
    %cst_17 = arith.constant dense<0xFF800000> : vector<8x128xf32>
    %33 = vector.multi_reduction <maximumf>, %32, %cst_17 [1] : vector<8x8x128xf32> to vector<8x128xf32>
    %34 = vector.extract_strided_slice %27 {offsets = [0, 0, 0], sizes = [8, 8, 128], strides = [1, 1, 1]} : vector<8x16x128xf32> to vector<8x8x128xf32>
    %cst_18 = arith.constant dense<0xFF800000> : vector<8x128xf32>
    %35 = vector.multi_reduction <maximumf>, %34, %cst_18 [1] : vector<8x8x128xf32> to vector<8x128xf32>
    %36 = arith.maximumf %33, %35 : vector<8x128xf32>
    %c0_19 = arith.constant 0 : index
    %c0_20 = arith.constant 0 : index
    %37 = vector.load %arg4[%c0_19, %c0_20] : memref<1x128xf32, #tpu.memory_space<vmem>>, vector<1x128xf32>
    %38 = vector.broadcast %37 : vector<1x128xf32> to vector<8x128xf32>
    %39 = arith.addf %36, %38 : vector<8x128xf32>
    %cst_21 = arith.constant 0.000000e+00 : f32
    %40 = vector.broadcast %cst_21 : f32 to vector<8x128xf32>
    %41 = arith.maximumf %39, %40 : vector<8x128xf32>
    %c0_22 = arith.constant 0 : index
    %c0_23 = arith.constant 0 : index
    %42 = vector.load %arg6[%c0_22, %c0_23] : memref<8x128xf32, #tpu.memory_space<vmem>>, vector<8x128xf32>
    tpu.vector_store %arg6[%c0_22, %c0_23], %41 {strides = array<i32>} : memref<8x128xf32, #tpu.memory_space<vmem>>, vector<8x128xf32>,
    return
  }
  func.func @transform_0(%arg0: i32) -> (i32, i32, i32) {
    %c0_i32 = arith.constant 0 : i32
    %c0_i32_0 = arith.constant 0 : i32
    %c0_i32_1 = arith.constant 0 : i32
    return %arg0, %c0_i32, %c0_i32_0 : i32, i32, i32
  }
  func.func @transform_1(%arg0: i32) -> (i32, i32) {
    %c0_i32 = arith.constant 0 : i32
    %c0_i32_0 = arith.constant 0 : i32
    %c0_i32_1 = arith.constant 0 : i32
    return %c0_i32, %c0_i32_0 : i32, i32
  }
  func.func @transform_2(%arg0: i32) -> (i32, i32) {
    %c0_i32 = arith.constant 0 : i32
    %c0_i32_0 = arith.constant 0 : i32
    %c0_i32_1 = arith.constant 0 : i32
    return %c0_i32, %c0_i32_0 : i32, i32
  }
  func.func @transform_3(%arg0: i32) -> (i32, i32) {
    %c0_i32 = arith.constant 0 : i32
    %c0_i32_0 = arith.constant 0 : i32
    %c0_i32_1 = arith.constant 0 : i32
    return %c0_i32, %c0_i32_0 : i32, i32
  }
  func.func @transform_4(%arg0: i32) -> (i32, i32) {
    %c0_i32 = arith.constant 0 : i32
    %c0_i32_0 = arith.constant 0 : i32
    %c0_i32_1 = arith.constant 0 : i32
    return %c0_i32, %c0_i32_0 : i32, i32
  }
  func.func @transform_5(%arg0: i32) -> (i32, i32) {
    %c0_i32 = arith.constant 0 : i32
    %c0_i32_0 = arith.constant 0 : i32
    return %arg0, %c0_i32 : i32, i32
  }
}

</mosaic_0001>

<llo_original>
// kernel: tpu_custom_call.1
$region0: #{tpu_custom_call.1}
  #allocation0 [shape = 'u32[]', space=smem, size = 0x4, offset = 0x4, fixed_abs, tag = 'smem constant byte address 0x4 - core index']
  #allocation1 [shape = 'u32[144,128]{1,0:T(1,128)}', space=vmem, size = 0x12000, scoped, tag = 'internal scratch']
  #allocation2 [shape = 'bf16[128,160]{1,0:T(16,128)(2,1)}', space=vmem, size = 0x10000, scoped, tag = 'scratch operand']
  %s0 = inlined_call_operand.vmem [shape: s32[16,16,1], index: 0, kind: input, shape index: {}]
  %s1 = inlined_call_operand.vmem [shape: bf16[32,32], index: 1, kind: input, shape index: {}]
  %s2 = inlined_call_operand.vmem [shape: bf16[160,128], index: 2, kind: input, shape index: {}]
  %s3 = inlined_call_operand.vmem [shape: f32[1,128], index: 3, kind: input, shape index: {}]
  %s4 = inlined_call_operand.vmem [shape: f32[8,128], index: 4, kind: input, shape index: {}]
  %s5 = inlined_call_operand.hbm [shape: f32[16,128], index: 5, kind: output, shape index: {}]
  %s6 = sld [smem:[#allocation0]]
  $region53: #{tpu_custom_call.1} parent=0
    _
  %s8 = ssub.s32 1, %s6
  %s9 = scalar_select 0, %s8, %s6
  $region1: #{tpu_custom_call.1} parent=0
    #allocation3 [shape = 'u8[8192]{0}', space=vmem, size = 0x2000, scoped, tag = 'output window, operand 0']
    #allocation4 [shape = 's32[2]{0}', space=sflag, size = 0x8, scoped, tag = 'scoped memory for tpu_custom_call.1']
    %10 = vsyncpa [#allocation4], 0
    %s11 = scalar_lea.sflag [#allocation4], 1
    %12 = vsyncpa %s11, 0
    loop: start=0, step=1, limit=4
    $region2: #{tpu_custom_call.1} parent=1 // loop_pre_header
      _
    $region3: #{tpu_custom_call.1} parent=1 // loop_header
      %s14 = sphi 0, %s18
      %p15 = scmp.ge.s32.totalorder %s14, 4
      %s24 = sphi 0, %s26
      %s27 = sphi 0, %s24
      %s28 = sphi 0, %s27
      %s44 = sphi 0, %s28
      %s48 = sphi 0, %s48
      %s50 = sphi 0, %s48
      %s51 = sphi 0, %s50
      %s65 = sphi 0, %s51
      %s69 = sphi 0, %s69
      %s71 = sphi 0, %s69
      %s72 = sphi 0, %s71
      %s86 = sphi 0, %s72
      %s90 = sphi 0, %s90
      %s92 = sphi 0, %s90
      %s93 = sphi 0, %s92
      %s107 = sphi 0, %s93
      %s111 = sphi 0, %s111
      %s113 = sphi 0, %s111
      %s114 = sphi 0, %s113
      %s128 = sphi 0, %s114
      %s134 = sphi 0, %s136
      %s137 = sphi 0, %s134
      %s138 = sphi 0, %s137
      %s154 = sphi 0, %s138
    $region4: #{tpu_custom_call.1} parent=1 // loop_header_branch
      %17 = sbr.rel (%p15) target = $region8
    $region5: #{tpu_custom_call.1} parent=1 // loop_body
      %s19 = ssub.s32 %s14, 1
      %s20 = ssub.s32 %s14, 2
      %s21 = sadd.s32 %s14, 1
      %s22 = ssub.s32 %s14, %s21
      %p23 = scmp.eq.s32.totalorder %s22, 0
      %s25 = sadd.s32 %s24, 1
      %s26 = scalar_select %p23, %s24, %s25
      %p29 = pneg %p23
      %p30 = scmp.eq.s32.totalorder %s14, 1
      %p31 = por %p29, %p30
      %p32 = scmp.ne.s32.totalorder %s24, %s27
      %p33 = scmp.eq.s32.totalorder %s14, 0
      %p34 = por %p32, %p33
      %p35 = scmp.ne.s32.totalorder %s24, %s27
      %p36 = scmp.eq.s32.totalorder %s19, 1
      %p37 = por %p35, %p36
      %p38 = scmp.ne.s32.totalorder %s27, %s28
      %p39 = scmp.eq.s32.totalorder %s19, 0
      %p40 = por %p38, %p39
      %p41 = scmp.ne.s32.totalorder %s27, %s28
      %p42 = scmp.eq.s32.totalorder %s20, 1
      %p43 = por %p41, %p42
      %p45 = scmp.ne.s32.totalorder %s28, %s44
      %p46 = scmp.eq.s32.totalorder %s20, 0
      %p47 = por %p45, %p46
      %s49 = sadd.s32 %s48, 1
      %p52 = scmp.eq.s32.totalorder %s14, 1
      %p53 = scmp.ne.s32.totalorder %s48, %s50
      %p54 = scmp.eq.s32.totalorder %s14, 0
      %p55 = por %p53, %p54
      %p56 = scmp.ne.s32.totalorder %s48, %s50
      %p57 = scmp.eq.s32.totalorder %s19, 1
      %p58 = por %p56, %p57
      %p59 = scmp.ne.s32.totalorder %s50, %s51
      %p60 = scmp.eq.s32.totalorder %s19, 0
      %p61 = por %p59, %p60
      %p62 = scmp.ne.s32.totalorder %s50, %s51
      %p63 = scmp.eq.s32.totalorder %s20, 1
      %p64 = por %p62, %p63
      %p66 = scmp.ne.s32.totalorder %s51, %s65
      %p67 = scmp.eq.s32.totalorder %s20, 0
      %p68 = por %p66, %p67
      %s70 = sadd.s32 %s69, 1
      %p73 = scmp.eq.s32.totalorder %s14, 1
      %p74 = scmp.ne.s32.totalorder %s69, %s71
      %p75 = scmp.eq.s32.totalorder %s14, 0
      %p76 = por %p74, %p75
      %p77 = scmp.ne.s32.totalorder %s69, %s71
      %p78 = scmp.eq.s32.totalorder %s19, 1
      %p79 = por %p77, %p78
      %p80 = scmp.ne.s32.totalorder %s71, %s72
      %p81 = scmp.eq.s32.totalorder %s19, 0
      %p82 = por %p80, %p81
      %p83 = scmp.ne.s32.totalorder %s71, %s72
      %p84 = scmp.eq.s32.totalorder %s20, 1
      %p85 = por %p83, %p84
      %p87 = scmp.ne.s32.totalorder %s72, %s86
      %p88 = scmp.eq.s32.totalorder %s20, 0
      %p89 = por %p87, %p88
      %s91 = sadd.s32 %s90, 1
      %p94 = scmp.eq.s32.totalorder %s14, 1
      %p95 = scmp.ne.s32.totalorder %s90, %s92
      %p96 = scmp.eq.s32.totalorder %s14, 0
      %p97 = por %p95, %p96
      %p98 = scmp.ne.s32.totalorder %s90, %s92
      %p99 = scmp.eq.s32.totalorder %s19, 1
      %p100 = por %p98, %p99
      %p101 = scmp.ne.s32.totalorder %s92, %s93
      %p102 = scmp.eq.s32.totalorder %s19, 0
      %p103 = por %p101, %p102
      %p104 = scmp.ne.s32.totalorder %s92, %s93
      %p105 = scmp.eq.s32.totalorder %s20, 1
      %p106 = por %p104, %p105
      %p108 = scmp.ne.s32.totalorder %s93, %s107
      %p109 = scmp.eq.s32.totalorder %s20, 0
      %p110 = por %p108, %p109
      %s112 = sadd.s32 %s111, 1
      %p115 = scmp.eq.s32.totalorder %s14, 1
      %p116 = scmp.ne.s32.totalorder %s111, %s113
      %p117 = scmp.eq.s32.totalorder %s14, 0
      %p118 = por %p116, %p117
      %p119 = scmp.ne.s32.totalorder %s111, %s113
      %p120 = scmp.eq.s32.totalorder %s19, 1
      %p121 = por %p119, %p120
      %p122 = scmp.ne.s32.totalorder %s113, %s114
      %p123 = scmp.eq.s32.totalorder %s19, 0
      %p124 = por %p122, %p123
      %p125 = scmp.ne.s32.totalorder %s113, %s114
      %p126 = scmp.eq.s32.totalorder %s20, 1
      %p127 = por %p125, %p126
      %p129 = scmp.ne.s32.totalorder %s114, %s128
      %p130 = scmp.eq.s32.totalorder %s20, 0
      %p131 = por %p129, %p130
      %s132 = ssub.s32 %s14, %s21
      %p133 = scmp.eq.s32.totalorder %s132, 0
      %s135 = sadd.s32 %s134, 1
      %s136 = scalar_select %p133, %s134, %s135
      %p139 = pneg %p133
      %p140 = scmp.eq.s32.totalorder %s14, 1
      %p141 = por %p139, %p140
      %p142 = scmp.ne.s32.totalorder %s134, %s137
      %p143 = scmp.eq.s32.totalorder %s14, 0
      %p144 = por %p142, %p143
      %p145 = scmp.ne.s32.totalorder %s134, %s137
      %p146 = scmp.eq.s32.totalorder %s19, 1
      %p147 = por %p145, %p146
      %p148 = scmp.ne.s32.totalorder %s137, %s138
      %p149 = scmp.eq.s32.totalorder %s19, 0
      %p150 = por %p148, %p149
      %p151 = scmp.ne.s32.totalorder %s137, %s138
      %p152 = scmp.eq.s32.totalorder %s20, 1
      %p153 = por %p151, %p152
      %p155 = scmp.ne.s32.totalorder %s138, %s154
      %p156 = scmp.eq.s32.totalorder %s20, 0
      %p157 = por %p155, %p156
      %p158 = scmp.le.s32.totalorder 1, %s14
      %p159 = scmp.lt.s32.totalorder %s14, 3
      %p160 = pnand %p158, %p159
      %p161 = pneg %p160
      // Predicated region
      $region9: #{tpu_custom_call.1} parent=5 // pred_check
        _
      $region10: #{tpu_custom_call.1} parent=5 // pred_check_branch
        %163 = sbr.rel (%p160) target = $region12
      $region11: #{tpu_custom_call.1} parent=5 // pred_region
        %s164 = ssub.s32 %s14, 1
        // Predicated region
        $region13: #{tpu_custom_call.1} parent=11 // pred_check
          %p165 = pneg %p61
        $region14: #{tpu_custom_call.1} parent=11 // pred_check_branch
          %167 = sbr.rel (%p165) target = $region16
        $region15: #{tpu_custom_call.1} parent=11 // pred_region
          _
        $region16: #{tpu_custom_call.1} parent=11 // pred_fallthru
          _
        // Predicated region
        $region17: #{tpu_custom_call.1} parent=11 // pred_check
          %p168 = pneg %p82
        $region18: #{tpu_custom_call.1} parent=11 // pred_check_branch
          %170 = sbr.rel (%p168) target = $region20
        $region19: #{tpu_custom_call.1} parent=11 // pred_region
          _
        $region20: #{tpu_custom_call.1} parent=11 // pred_fallthru
          _
        // Predicated region
        $region21: #{tpu_custom_call.1} parent=11 // pred_check
          %p171 = pneg %p103
        $region22: #{tpu_custom_call.1} parent=11 // pred_check_branch
          %173 = sbr.rel (%p171) target = $region24
        $region23: #{tpu_custom_call.1} parent=11 // pred_region
          _
        $region24: #{tpu_custom_call.1} parent=11 // pred_fallthru
          _
        // Predicated region
        $region25: #{tpu_custom_call.1} parent=11 // pred_check
          %p174 = pneg %p124
        $region26: #{tpu_custom_call.1} parent=11 // pred_check_branch
          %176 = sbr.rel (%p174) target = $region28
        $region27: #{tpu_custom_call.1} parent=11 // pred_region
          _
        $region28: #{tpu_custom_call.1} parent=11 // pred_fallthru
          _
      $region12: #{tpu_custom_call.1} parent=5 // pred_fallthru
        _
      %p177 = scmp.lt.s32.totalorder %s14, 2
      // Predicated region
      $region29: #{tpu_custom_call.1} parent=5 // pred_check
        %p178 = pneg %p177
      $region30: #{tpu_custom_call.1} parent=5 // pred_check_branch
        %180 = sbr.rel (%p178) target = $region32
      $region31: #{tpu_custom_call.1} parent=5 // pred_region
        // Predicated region
        $region33: #{tpu_custom_call.1} parent=31 // pred_check
          %p181 = pneg %p34
        $region34: #{tpu_custom_call.1} parent=31 // pred_check_branch
          %183 = sbr.rel (%p181) target = $region36
        $region35: #{tpu_custom_call.1} parent=31 // pred_region
          %s184 = smul.u32 8, %s14
          %p185 = scmp.lt.s32.totalorder %s184, 15
          %s186 = scalar_select %p185, %s184, 15
          %s187 = smul.addr %s186, 2
          %s188 = smul.addr %s187, 8
          %s189 = scalar_lea.vmem %s0, %s188
          %s190 = smul.u32 8, %s14
        $region36: #{tpu_custom_call.1} parent=31 // pred_fallthru
          _
      $region32: #{tpu_custom_call.1} parent=5 // pred_fallthru
        _
      %p191 = scmp.le.s32.totalorder 1, %s14
      %p192 = scmp.lt.s32.totalorder %s14, 3
      %p193 = pnand %p191, %p192
      %p194 = pneg %p193
      // Predicated region
      $region37: #{tpu_custom_call.1} parent=5 // pred_check
        _
      $region38: #{tpu_custom_call.1} parent=5 // pred_check_branch
        %196 = sbr.rel (%p193) target = $region40
      $region39: #{tpu_custom_call.1} parent=5 // pred_region
        %s197 = ssub.s32 %s14, 1
        %s198 = smul.u32 8, %s19
        %p199 = scmp.lt.s32.totalorder %s198, 15
        %s200 = scalar_select %p199, %s198, 15
        %s201 = smul.addr %s200, 2
        %s202 = smul.addr %s201, 8
        %s203 = scalar_lea.vmem %s0, %s202
        %p204 = pneg %p40
        %p205 = pneg %p37
        %p206 = pneg %p61
        %p207 = pneg %p58
        %p208 = pneg %p82
        %p209 = pneg %p79
        %p210 = pneg %p103
        %p211 = pneg %p100
        %p212 = pneg %p124
        %p213 = pneg %p121
        %p214 = pneg %p150
        %p215 = pneg %p147
        %s216 = sand.u32 %s137, 1
        %s217 = scalar_lea.sflag [#allocation4], %s216
        %s218 = sand.u32 %s137, 1
        %s219 = smul.addr %s218, 8
        %s220 = scalar_lea.vmem [#allocation3], %s219
        %s221 = smul.u32 8, %s19
        %p222 = scmp.lt.s32.totalorder %s221, 15
        %s223 = scalar_select %p222, %s221, 15
        %s224 = smul.addr %s223, 2
        %s225 = smul.addr %s224, 8
        %s226 = scalar_lea.vmem %s0, %s225
        %s227 = smul.u32 8, %s19
        %v229 = vld [vmem:[%s226] sm:$0xff]
        %v230 = vld [vmem:[%s226 + $0x8] sm:$0xff]
        %v231 = vld [vmem:[%s226 + $0x10] sm:$0xff]
        %v232 = vld [vmem:[%s226 + $0x18] sm:$0xff]
        %v233 = vld [vmem:[%s226 + $0x20] sm:$0xff]
        %v234 = vld [vmem:[%s226 + $0x28] sm:$0xff]
        %v235 = vld [vmem:[%s226 + $0x30] sm:$0xff]
        %v236 = vld [vmem:[%s226 + $0x38] sm:$0xff]
        %v237 = vld [vmem:[%s226 + $0x40] sm:$0xff]
        %v238 = vld [vmem:[%s226 + $0x48] sm:$0xff]
        %v239 = vld [vmem:[%s226 + $0x50] sm:$0xff]
        %v240 = vld [vmem:[%s226 + $0x58] sm:$0xff]
        %v241 = vld [vmem:[%s226 + $0x60] sm:$0xff]
        %v242 = vld [vmem:[%s226 + $0x68] sm:$0xff]
        %v243 = vld [vmem:[%s226 + $0x70] sm:$0xff]
        %v244 = vld [vmem:[%s226 + $0x78] sm:$0xff]
        %v245 = vlaneseq
        %v246 = vand.u32 %v245, 127
        %247 = vset.pattern.permute.xlu0 0
        %248 = vperm.xlu0 %247, %v229
        %v249 = vpop.permute.xlu0 %248
        %250 = vset.pattern.permute.xlu0 0
        %251 = vperm.xlu0 %250, %v230
        %v252 = vpop.permute.xlu0 %251
        %253 = vset.pattern.permute.xlu0 0
        %254 = vperm.xlu0 %253, %v231
        %v255 = vpop.permute.xlu0 %254
        %256 = vset.pattern.permute.xlu0 0
        %257 = vperm.xlu0 %256, %v232
        %v258 = vpop.permute.xlu0 %257
        %259 = vset.pattern.permute.xlu0 0
        %260 = vperm.xlu0 %259, %v233
        %v261 = vpop.permute.xlu0 %260
        %262 = vset.pattern.permute.xlu0 0
        %263 = vperm.xlu0 %262, %v234
        %v264 = vpop.permute.xlu0 %263
        %265 = vset.pattern.permute.xlu0 0
        %266 = vperm.xlu0 %265, %v235
        %v267 = vpop.permute.xlu0 %266
        %268 = vset.pattern.permute.xlu0 0
        %269 = vperm.xlu0 %268, %v236
        %v270 = vpop.permute.xlu0 %269
        %271 = vset.pattern.permute.xlu0 0
        %272 = vperm.xlu0 %271, %v237
        %v273 = vpop.permute.xlu0 %272
        %274 = vset.pattern.permute.xlu0 0
        %275 = vperm.xlu0 %274, %v238
        %v276 = vpop.permute.xlu0 %275
        %277 = vset.pattern.permute.xlu0 0
        %278 = vperm.xlu0 %277, %v239
        %v279 = vpop.permute.xlu0 %278
        %280 = vset.pattern.permute.xlu0 0
        %281 = vperm.xlu0 %280, %v240
        %v282 = vpop.permute.xlu0 %281
        %283 = vset.pattern.permute.xlu0 0
        %284 = vperm.xlu0 %283, %v241
        %v285 = vpop.permute.xlu0 %284
        %286 = vset.pattern.permute.xlu0 0
        %287 = vperm.xlu0 %286, %v242
        %v288 = vpop.permute.xlu0 %287
        %289 = vset.pattern.permute.xlu0 0
        %290 = vperm.xlu0 %289, %v243
        %v291 = vpop.permute.xlu0 %290
        %292 = vset.pattern.permute.xlu0 0
        %293 = vperm.xlu0 %292, %v244
        %v294 = vpop.permute.xlu0 %293
        %vm295 = vcmp.eq.s32.totalorder %v249, %v246
        %vm296 = vcmp.eq.s32.totalorder %v252, %v246
        %vm297 = vcmp.eq.s32.totalorder %v255, %v246
        %vm298 = vcmp.eq.s32.totalorder %v258, %v246
        %vm299 = vcmp.eq.s32.totalorder %v261, %v246
        %vm300 = vcmp.eq.s32.totalorder %v264, %v246
        %vm301 = vcmp.eq.s32.totalorder %v267, %v246
        %vm302 = vcmp.eq.s32.totalorder %v270, %v246
        %vm303 = vcmp.eq.s32.totalorder %v273, %v246
        %vm304 = vcmp.eq.s32.totalorder %v276, %v246
        %vm305 = vcmp.eq.s32.totalorder %v279, %v246
        %vm306 = vcmp.eq.s32.totalorder %v282, %v246
        %vm307 = vcmp.eq.s32.totalorder %v285, %v246
        %vm308 = vcmp.eq.s32.totalorder %v288, %v246
        %vm309 = vcmp.eq.s32.totalorder %v291, %v246
        %vm310 = vcmp.eq.s32.totalorder %v294, %v246
        %v311 = vsel %vm295, 1, 0
        %v312 = vsel %vm296, 1, 0
        %v313 = vsel %vm297, 1, 0
        %v314 = vsel %vm298, 1, 0
        %v315 = vsel %vm299, 1, 0
        %v316 = vsel %vm300, 1, 0
        %v317 = vsel %vm301, 1, 0
        %v318 = vsel %vm302, 1, 0
        %v319 = vsel %vm303, 1, 0
        %v320 = vsel %vm304, 1, 0
        %v321 = vsel %vm305, 1, 0
        %v322 = vsel %vm306, 1, 0
        %v323 = vsel %vm307, 1, 0
        %v324 = vsel %vm308, 1, 0
        %v325 = vsel %vm309, 1, 0
        %v326 = vsel %vm310, 1, 0
        %v327 = vcvt.s32.f32 %v311
        %v328 = vcvt.s32.f32 %v312
        %v329 = vcvt.s32.f32 %v313
        %v330 = vcvt.s32.f32 %v314
        %v331 = vcvt.s32.f32 %v315
        %v332 = vcvt.s32.f32 %v316
        %v333 = vcvt.s32.f32 %v317
        %v334 = vcvt.s32.f32 %v318
        %v335 = vcvt.s32.f32 %v319
        %v336 = vcvt.s32.f32 %v320
        %v337 = vcvt.s32.f32 %v321
        %v338 = vcvt.s32.f32 %v322
        %v339 = vcvt.s32.f32 %v323
        %v340 = vcvt.s32.f32 %v324
        %v341 = vcvt.s32.f32 %v325
        %v342 = vcvt.s32.f32 %v326
        %v343 = vpack.c.bf16 %v328, %v327
        %v344 = vpack.c.bf16 %v330, %v329
        %v345 = vpack.c.bf16 %v332, %v331
        %v346 = vpack.c.bf16 %v334, %v333
        %v347 = vpack.c.bf16 %v336, %v335
        %v348 = vpack.c.bf16 %v338, %v337
        %v349 = vpack.c.bf16 %v340, %v339
        %v350 = vpack.c.bf16 %v342, %v341
        %v351 = vld [vmem:[%s1] sm:$0xf]
        %v352 = vld [vmem:[%s1 + $0x4] sm:$0xf]
        %v353 = vld [vmem:[%s1 + $0x8] sm:$0xf]
        %v354 = vld [vmem:[%s1 + $0xc] sm:$0xf]
        %v359 = vunpack.c.l.b16 %v351
        %v360 = vunpack.c.l.b16 %v352
        %v361 = vunpack.c.l.b16 %v353
        %v362 = vunpack.c.l.b16 %v354
        %v363 = vpack.c.b16 %v360, %v359
        %v364 = vpack.c.b16 %v362, %v361
        %vm367 = vcmask 261120
        %v369 = vsel %vm367, %v343, 0
        %v372 = vsel %vm367, %v344, 0
        %v375 = vsel %vm367, %v345, 0
        %v378 = vsel %vm367, %v346, 0
        %v381 = vsel %vm367, %v347, 0
        %v384 = vsel %vm367, %v348, 0
        %v387 = vsel %vm367, %v349, 0
        %v390 = vsel %vm367, %v350, 0
        %392 = vmatprep.subr.bf16.mxu0 0
        %393 = vmatpush1.bf16.msra.mxu0 %v363
        %394 = vmatprep.subr.bf16.mxu0 0
        %395 = vmatpush1.bf16.msra.mxu0 %v364
        %396 = vmatprep.subr.bf16.mxu0 0
        %397 = vmatpush1.bf16.msra.mxu0 0
        %398 = vmatprep.subr.bf16.mxu0 0
        %399 = vmatpush1.bf16.msra.mxu0 0
        %400 = vmatprep.subr.bf16.mxu0 0
        %401 = vmatpush1.bf16.msra.mxu0 0
        %402 = vmatprep.subr.bf16.mxu0 0
        %403 = vmatpush1.bf16.msra.mxu0 0
        %404 = vmatprep.subr.bf16.mxu0 0
        %405 = vmatpush1.bf16.msra.mxu0 0
        %406 = vmatprep.subr.bf16.mxu0 0
        %407 = vmatpush1.bf16.msra.mxu0 0
        %408 = vmatprep.subr.bf16.mxu0 0
        %409 = vmatpush1.bf16.msra.mxu0 0
        %410 = vmatprep.subr.bf16.mxu0 0
        %411 = vmatpush1.bf16.msra.mxu0 0
        %412 = vmatprep.subr.bf16.mxu0 0
        %413 = vmatpush1.bf16.msra.mxu0 0
        %414 = vmatprep.subr.bf16.mxu0 0
        %415 = vmatpush1.bf16.msra.mxu0 0
        %416 = vmatprep.subr.bf16.mxu0 0
        %417 = vmatpush1.bf16.msra.mxu0 0
        %418 = vmatprep.subr.bf16.mxu0 0
        %419 = vmatpush1.bf16.msra.mxu0 0
        %420 = vmatprep.subr.bf16.mxu0 0
        %421 = vmatpush1.bf16.msra.mxu0 0
        %422 = vmatprep.subr.bf16.mxu0 0
        %423 = vmatpush1.bf16.msra.mxu0 0
        %424 = vmatprep.mubr.bf16.mxu0 0
        %425 = vmatmul.mubr.bf16.gmra.mrb[0].mxu0 %v369
        %v426 = vpop.f32.mrb[0].mxu0
        %v427 = vadd.f32 0.0, %v426
        %v428 = vpop.f32.mrb[0].mxu0
        %v429 = vpop.f32.mrb[0].mxu0
        %v430 = vadd.f32 0.0, %v429
        %v431 = vpop.f32.mrb[0].mxu0
        %432 = vmatprep.mubr.bf16.mxu0 0
        %433 = vmatmul.mubr.bf16.gmra.mrb[0].mxu0 %v372
        %v434 = vpop.f32.mrb[0].mxu0
        %v435 = vadd.f32 0.0, %v434
        %v436 = vpop.f32.mrb[0].mxu0
        %v437 = vpop.f32.mrb[0].mxu0
        %v438 = vadd.f32 0.0, %v437
        %v439 = vpop.f32.mrb[0].mxu0
        %440 = vmatprep.mubr.bf16.mxu0 0
        %441 = vmatmul.mubr.bf16.gmra.mrb[0].mxu0 %v375
        %v442 = vpop.f32.mrb[0].mxu0
        %v443 = vadd.f32 0.0, %v442
        %v444 = vpop.f32.mrb[0].mxu0
        %v445 = vpop.f32.mrb[0].mxu0
        %v446 = vadd.f32 0.0, %v445
        %v447 = vpop.f32.mrb[0].mxu0
        %448 = vmatprep.mubr.bf16.mxu0 0
        %449 = vmatmul.mubr.bf16.gmra.mrb[0].mxu0 %v378
        %v450 = vpop.f32.mrb[0].mxu0
        %v451 = vadd.f32 0.0, %v450
        %v452 = vpop.f32.mrb[0].mxu0
        %v453 = vpop.f32.mrb[0].mxu0
        %v454 = vadd.f32 0.0, %v453
        %v455 = vpop.f32.mrb[0].mxu0
        %456 = vmatprep.mubr.bf16.mxu0 0
        %457 = vmatmul.mubr.bf16.gmra.mrb[0].mxu0 %v381
        %v458 = vpop.f32.mrb[0].mxu0
        %v459 = vadd.f32 0.0, %v458
        %v460 = vpop.f32.mrb[0].mxu0
        %v461 = vpop.f32.mrb[0].mxu0
        %v462 = vadd.f32 0.0, %v461
        %v463 = vpop.f32.mrb[0].mxu0
        %464 = vmatprep.mubr.bf16.mxu0 0
        %465 = vmatmul.mubr.bf16.gmra.mrb[0].mxu0 %v384
        %v466 = vpop.f32.mrb[0].mxu0
        %v467 = vadd.f32 0.0, %v466
        %v468 = vpop.f32.mrb[0].mxu0
        %v469 = vpop.f32.mrb[0].mxu0
        %v470 = vadd.f32 0.0, %v469
        %v471 = vpop.f32.mrb[0].mxu0
        %472 = vmatprep.mubr.bf16.mxu0 0
        %473 = vmatmul.mubr.bf16.gmra.mrb[0].mxu0 %v387
        %v474 = vpop.f32.mrb[0].mxu0
        %v475 = vadd.f32 0.0, %v474
        %v476 = vpop.f32.mrb[0].mxu0
        %v477 = vpop.f32.mrb[0].mxu0
        %v478 = vadd.f32 0.0, %v477
        %v479 = vpop.f32.mrb[0].mxu0
        %480 = vmatprep.mubr.bf16.mxu0 0
        %481 = vmatmul.mubr.bf16.gmra.mrb[0].mxu0 %v390
        %v482 = vpop.f32.mrb[0].mxu0
        %v483 = vadd.f32 0.0, %v482
        %v484 = vpop.f32.mrb[0].mxu0
        %v485 = vpop.f32.mrb[0].mxu0
        %v486 = vadd.f32 0.0, %v485
        %v487 = vpop.f32.mrb[0].mxu0
        %488 = vdwg.mxu0
        %v489 = vpack.c.bf16 %v430, %v427
        %v490 = vpack.c.bf16 %v438, %v435
        %v491 = vpack.c.bf16 %v446, %v443
        %v492 = vpack.c.bf16 %v454, %v451
        %v493 = vpack.c.bf16 %v462, %v459
        %v494 = vpack.c.bf16 %v470, %v467
        %v495 = vpack.c.bf16 %v478, %v475
        %v496 = vpack.c.bf16 %v486, %v483
        %497 = vst.msk [vmem:[#allocation2] sm:$0xff] %vm367, %v489
        %498 = vst.msk [vmem:[#allocation2 + $0x10] sm:$0xff] %vm367, %v490
        %499 = vst.msk [vmem:[#allocation2 + $0x20] sm:$0xff] %vm367, %v491
        %500 = vst.msk [vmem:[#allocation2 + $0x30] sm:$0xff] %vm367, %v492
        %501 = vst.msk [vmem:[#allocation2 + $0x40] sm:$0xff] %vm367, %v493
        %502 = vst.msk [vmem:[#allocation2 + $0x50] sm:$0xff] %vm367, %v494
        %503 = vst.msk [vmem:[#allocation2 + $0x60] sm:$0xff] %vm367, %v495
        %504 = vst.msk [vmem:[#allocation2 + $0x70] sm:$0xff] %vm367, %v496
        %v505 = vrot.slane %v427, 1
        %v506 = vrot.slane %v430, 1
        %v507 = vrot.slane %v435, 1
        %v508 = vrot.slane %v438, 1
        %v509 = vrot.slane %v443, 1
        %v510 = vrot.slane %v446, 1
        %v511 = vrot.slane %v451, 1
        %v512 = vrot.slane %v454, 1
        %v513 = vrot.slane %v459, 1
        %v514 = vrot.slane %v462, 1
        %v515 = vrot.slane %v467, 1
        %v516 = vrot.slane %v470, 1
        %v517 = vrot.slane %v475, 1
        %v518 = vrot.slane %v478, 1
        %v519 = vrot.slane %v483, 1
        %v520 = vrot.slane %v486, 1
        %v521 = vlaneseq
        %v522 = vshrl.u32 %v521, 7
        %vm523 = vcmp.lt.s32.totalorder %v522, 7
        %v524 = vsel %vm523, %v519, %v520
        %v525 = vsel %vm523, %v518, %v519
        %v526 = vsel %vm523, %v517, %v518
        %v527 = vsel %vm523, %v516, %v517
        %v528 = vsel %vm523, %v515, %v516
        %v529 = vsel %vm523, %v514, %v515
        %v530 = vsel %vm523, %v513, %v514
        %v531 = vsel %vm523, %v512, %v513
        %v532 = vsel %vm523, %v511, %v512
        %v533 = vsel %vm523, %v510, %v511
        %v534 = vsel %vm523, %v509, %v510
        %v535 = vsel %vm523, %v508, %v509
        %v536 = vsel %vm523, %v507, %v508
        %v537 = vsel %vm523, %v506, %v507
        %v538 = vsel %vm523, %v505, %v506
        %v539 = vsel %vm523, %v520, %v505
        %v540 = vpack.c.bf16 %v537, %v538
        %v541 = vpack.c.bf16 %v535, %v536
        %v542 = vpack.c.bf16 %v533, %v534
        %v543 = vpack.c.bf16 %v531, %v532
        %v544 = vpack.c.bf16 %v529, %v530
        %v545 = vpack.c.bf16 %v527, %v528
        %v546 = vpack.c.bf16 %v525, %v526
        %v547 = vpack.c.bf16 %v539, %v524
        %556 = vrot.lane.b32.xlu0 %v540, 32
        %v557 = vpop.permute.xlu0 %556
        %558 = vrot.lane.b32.xlu0 %v541, 32
        %v559 = vpop.permute.xlu0 %558
        %560 = vrot.lane.b32.xlu0 %v542, 32
        %v561 = vpop.permute.xlu0 %560
        %562 = vrot.lane.b32.xlu0 %v543, 32
        %v563 = vpop.permute.xlu0 %562
        %564 = vrot.lane.b32.xlu0 %v544, 32
        %v565 = vpop.permute.xlu0 %564
        %566 = vrot.lane.b32.xlu0 %v545, 32
        %v567 = vpop.permute.xlu0 %566
        %568 = vrot.lane.b32.xlu0 %v546, 32
        %v569 = vpop.permute.xlu0 %568
        %570 = vrot.lane.b32.xlu0 %v547, 32
        %v571 = vpop.permute.xlu0 %570
        %vm580 = vcmask 523520
        %581 = vst.msk [vmem:[#allocation2] sm:$0xff] %vm580, %v557
        %582 = vst.msk [vmem:[#allocation2 + $0x10] sm:$0xff] %vm580, %v559
        %583 = vst.msk [vmem:[#allocation2 + $0x20] sm:$0xff] %vm580, %v561
        %584 = vst.msk [vmem:[#allocation2 + $0x30] sm:$0xff] %vm580, %v563
        %585 = vst.msk [vmem:[#allocation2 + $0x40] sm:$0xff] %vm580, %v565
        %586 = vst.msk [vmem:[#allocation2 + $0x50] sm:$0xff] %vm580, %v567
        %587 = vst.msk [vmem:[#allocation2 + $0x60] sm:$0xff] %vm580, %v569
        %588 = vst.msk [vmem:[#allocation2 + $0x70] sm:$0xff] %vm580, %v571
        %v589 = vrot.slane %v427, 2
        %v590 = vrot.slane %v430, 2
        %v591 = vrot.slane %v435, 2
        %v592 = vrot.slane %v438, 2
        %v593 = vrot.slane %v443, 2
        %v594 = vrot.slane %v446, 2
        %v595 = vrot.slane %v451, 2
        %v596 = vrot.slane %v454, 2
        %v597 = vrot.slane %v459, 2
        %v598 = vrot.slane %v462, 2
        %v599 = vrot.slane %v467, 2
        %v600 = vrot.slane %v470, 2
        %v601 = vrot.slane %v475, 2
        %v602 = vrot.slane %v478, 2
        %v603 = vrot.slane %v483, 2
        %v604 = vrot.slane %v486, 2
        %vm605 = vcmp.lt.s32.totalorder %v522, 6
        %v606 = vsel %vm605, %v603, %v604
        %v607 = vsel %vm605, %v602, %v603
        %v608 = vsel %vm605, %v601, %v602
        %v609 = vsel %vm605, %v600, %v601
        %v610 = vsel %vm605, %v599, %v600
        %v611 = vsel %vm605, %v598, %v599
        %v612 = vsel %vm605, %v597, %v598
        %v613 = vsel %vm605, %v596, %v597
        %v614 = vsel %vm605, %v595, %v596
        %v615 = vsel %vm605, %v594, %v595
        %v616 = vsel %vm605, %v593, %v594
        %v617 = vsel %vm605, %v592, %v593
        %v618 = vsel %vm605, %v591, %v592
        %v619 = vsel %vm605, %v590, %v591
        %v620 = vsel %vm605, %v589, %v590
        %v621 = vsel %vm605, %v604, %v589
        %v622 = vpack.c.bf16 %v619, %v620
        %v623 = vpack.c.bf16 %v617, %v618
        %v624 = vpack.c.bf16 %v615, %v616
        %v625 = vpack.c.bf16 %v613, %v614
        %v626 = vpack.c.bf16 %v611, %v612
        %v627 = vpack.c.bf16 %v609, %v610
        %v628 = vpack.c.bf16 %v607, %v608
        %v629 = vpack.c.bf16 %v621, %v606
        %638 = vrot.lane.b32.xlu0 %v622, 64
        %v639 = vpop.permute.xlu0 %638
        %640 = vrot.lane.b32.xlu0 %v623, 64
        %v641 = vpop.permute.xlu0 %640
        %642 = vrot.lane.b32.xlu0 %v624, 64
        %v643 = vpop.permute.xlu0 %642
        %644 = vrot.lane.b32.xlu0 %v625, 64
        %v645 = vpop.permute.xlu0 %644
        %646 = vrot.lane.b32.xlu0 %v626, 64
        %v647 = vpop.permute.xlu0 %646
        %648 = vrot.lane.b32.xlu0 %v627, 64
        %v649 = vpop.permute.xlu0 %648
        %650 = vrot.lane.b32.xlu0 %v628, 64
        %v651 = vpop.permute.xlu0 %650
        %652 = vrot.lane.b32.xlu0 %v629, 64
        %v653 = vpop.permute.xlu0 %652
        %vm662 = vcmask 785920
        %663 = vst.msk [vmem:[#allocation2] sm:$0xff] %vm662, %v639
        %664 = vst.msk [vmem:[#allocation2 + $0x10] sm:$0xff] %vm662, %v641
        %665 = vst.msk [vmem:[#allocation2 + $0x20] sm:$0xff] %vm662, %v643
        %666 = vst.msk [vmem:[#allocation2 + $0x30] sm:$0xff] %vm662, %v645
        %667 = vst.msk [vmem:[#allocation2 + $0x40] sm:$0xff] %vm662, %v647
        %668 = vst.msk [vmem:[#allocation2 + $0x50] sm:$0xff] %vm662, %v649
        %669 = vst.msk [vmem:[#allocation2 + $0x60] sm:$0xff] %vm662, %v651
        %670 = vst.msk [vmem:[#allocation2 + $0x70] sm:$0xff] %vm662, %v653
        %v671 = vrot.slane %v427, 3
        %v672 = vrot.slane %v430, 3
        %v673 = vrot.slane %v435, 3
        %v674 = vrot.slane %v438, 3
        %v675 = vrot.slane %v443, 3
        %v676 = vrot.slane %v446, 3
        %v677 = vrot.slane %v451, 3
        %v678 = vrot.slane %v454, 3
        %v679 = vrot.slane %v459, 3
        %v680 = vrot.slane %v462, 3
        %v681 = vrot.slane %v467, 3
        %v682 = vrot.slane %v470, 3
        %v683 = vrot.slane %v475, 3
        %v684 = vrot.slane %v478, 3
        %v685 = vrot.slane %v483, 3
        %v686 = vrot.slane %v486, 3
        %vm687 = vcmp.lt.s32.totalorder %v522, 5
        %v688 = vsel %vm687, %v685, %v686
        %v689 = vsel %vm687, %v684, %v685
        %v690 = vsel %vm687, %v683, %v684
        %v691 = vsel %vm687, %v682, %v683
        %v692 = vsel %vm687, %v681, %v682
        %v693 = vsel %vm687, %v680, %v681
        %v694 = vsel %vm687, %v679, %v680
        %v695 = vsel %vm687, %v678, %v679
        %v696 = vsel %vm687, %v677, %v678
        %v697 = vsel %vm687, %v676, %v677
        %v698 = vsel %vm687, %v675, %v676
        %v699 = vsel %vm687, %v674, %v675
        %v700 = vsel %vm687, %v673, %v674
        %v701 = vsel %vm687, %v672, %v673
        %v702 = vsel %vm687, %v671, %v672
        %v703 = vsel %vm687, %v686, %v671
        %v704 = vpack.c.bf16 %v701, %v702
        %v705 = vpack.c.bf16 %v699, %v700
        %v706 = vpack.c.bf16 %v697, %v698
        %v707 = vpack.c.bf16 %v695, %v696
        %v708 = vpack.c.bf16 %v693, %v694
        %v709 = vpack.c.bf16 %v691, %v692
        %v710 = vpack.c.bf16 %v689, %v690
        %v711 = vpack.c.bf16 %v703, %v688
        %720 = vrot.lane.b32.xlu0 %v704, 96
        %v721 = vpop.permute.xlu0 %720
        %722 = vrot.lane.b32.xlu0 %v705, 96
        %v723 = vpop.permute.xlu0 %722
        %724 = vrot.lane.b32.xlu0 %v706, 96
        %v725 = vpop.permute.xlu0 %724
        %726 = vrot.lane.b32.xlu0 %v707, 96
        %v727 = vpop.permute.xlu0 %726
        %728 = vrot.lane.b32.xlu0 %v708, 96
        %v729 = vpop.permute.xlu0 %728
        %730 = vrot.lane.b32.xlu0 %v709, 96
        %v731 = vpop.permute.xlu0 %730
        %732 = vrot.lane.b32.xlu0 %v710, 96
        %v733 = vpop.permute.xlu0 %732
        %734 = vrot.lane.b32.xlu0 %v711, 96
        %v735 = vpop.permute.xlu0 %734
        %vm744 = vcmask 1048320
        %745 = vst.msk [vmem:[#allocation2] sm:$0xff] %vm744, %v721
        %746 = vst.msk [vmem:[#allocation2 + $0x10] sm:$0xff] %vm744, %v723
        %747 = vst.msk [vmem:[#allocation2 + $0x20] sm:$0xff] %vm744, %v725
        %748 = vst.msk [vmem:[#allocation2 + $0x30] sm:$0xff] %vm744, %v727
        %749 = vst.msk [vmem:[#allocation2 + $0x40] sm:$0xff] %vm744, %v729
        %750 = vst.msk [vmem:[#allocation2 + $0x50] sm:$0xff] %vm744, %v731
        %751 = vst.msk [vmem:[#allocation2 + $0x60] sm:$0xff] %vm744, %v733
        %752 = vst.msk [vmem:[#allocation2 + $0x70] sm:$0xff] %vm744, %v735
        %v753 = vrot.slane %v427, 4
        %v754 = vrot.slane %v430, 4
        %v755 = vrot.slane %v435, 4
        %v756 = vrot.slane %v438, 4
        %v757 = vrot.slane %v443, 4
        %v758 = vrot.slane %v446, 4
        %v759 = vrot.slane %v451, 4
        %v760 = vrot.slane %v454, 4
        %v761 = vrot.slane %v459, 4
        %v762 = vrot.slane %v462, 4
        %v763 = vrot.slane %v467, 4
        %v764 = vrot.slane %v470, 4
        %v765 = vrot.slane %v475, 4
        %v766 = vrot.slane %v478, 4
        %v767 = vrot.slane %v483, 4
        %v768 = vrot.slane %v486, 4
        %vm769 = vcmp.lt.s32.totalorder %v522, 4
        %v770 = vsel %vm769, %v767, %v768
        %v771 = vsel %vm769, %v766, %v767
        %v772 = vsel %vm769, %v765, %v766
        %v773 = vsel %vm769, %v764, %v765
        %v774 = vsel %vm769, %v763, %v764
        %v775 = vsel %vm769, %v762, %v763
        %v776 = vsel %vm769, %v761, %v762
        %v777 = vsel %vm769, %v760, %v761
        %v778 = vsel %vm769, %v759, %v760
        %v779 = vsel %vm769, %v758, %v759
        %v780 = vsel %vm769, %v757, %v758
        %v781 = vsel %vm769, %v756, %v757
        %v782 = vsel %vm769, %v755, %v756
        %v783 = vsel %vm769, %v754, %v755
        %v784 = vsel %vm769, %v753, %v754
        %v785 = vsel %vm769, %v768, %v753
        %v786 = vpack.c.bf16 %v783, %v784
        %v787 = vpack.c.bf16 %v781, %v782
        %v788 = vpack.c.bf16 %v779, %v780
        %v789 = vpack.c.bf16 %v777, %v778
        %v790 = vpack.c.bf16 %v775, %v776
        %v791 = vpack.c.bf16 %v773, %v774
        %v792 = vpack.c.bf16 %v771, %v772
        %v793 = vpack.c.bf16 %v785, %v770
        %794 = vst.msk [vmem:[#allocation2 + $0x8] sm:$0xff] %vm367, %v786
        %795 = vst.msk [vmem:[#allocation2 + $0x18] sm:$0xff] %vm367, %v787
        %796 = vst.msk [vmem:[#allocation2 + $0x28] sm:$0xff] %vm367, %v788
        %797 = vst.msk [vmem:[#allocation2 + $0x38] sm:$0xff] %vm367, %v789
        %798 = vst.msk [vmem:[#allocation2 + $0x48] sm:$0xff] %vm367, %v790
        %799 = vst.msk [vmem:[#allocation2 + $0x58] sm:$0xff] %vm367, %v791
        %800 = vst.msk [vmem:[#allocation2 + $0x68] sm:$0xff] %vm367, %v792
        %801 = vst.msk [vmem:[#allocation2 + $0x78] sm:$0xff] %vm367, %v793
        %v802 = vld [vmem:[#allocation2] sm:$0xff]
        %v803 = vld [vmem:[#allocation2 + $0x8] sm:$0xff]
        %v804 = vld [vmem:[#allocation2 + $0x10] sm:$0xff]
        %v805 = vld [vmem:[#allocation2 + $0x18] sm:$0xff]
        %v806 = vld [vmem:[#allocation2 + $0x20] sm:$0xff]
        %v807 = vld [vmem:[#allocation2 + $0x28] sm:$0xff]
        %v808 = vld [vmem:[#allocation2 + $0x30] sm:$0xff]
        %v809 = vld [vmem:[#allocation2 + $0x38] sm:$0xff]
        %v810 = vld [vmem:[#allocation2 + $0x40] sm:$0xff]
        %v811 = vld [vmem:[#allocation2 + $0x48] sm:$0xff]
        %v812 = vld [vmem:[#allocation2 + $0x50] sm:$0xff]
        %v813 = vld [vmem:[#allocation2 + $0x58] sm:$0xff]
        %v814 = vld [vmem:[#allocation2 + $0x60] sm:$0xff]
        %v815 = vld [vmem:[#allocation2 + $0x68] sm:$0xff]
        %v816 = vld [vmem:[#allocation2 + $0x70] sm:$0xff]
        %v817 = vld [vmem:[#allocation2 + $0x78] sm:$0xff]
        %v818 = vld [vmem:[%s2] sm:$0xf]
        %v819 = vld [vmem:[%s2 + $0x4] sm:$0xf]
        %v820 = vld [vmem:[%s2 + $0x8] sm:$0xf]
        %v821 = vld [vmem:[%s2 + $0xc] sm:$0xf]
        %v822 = vld [vmem:[%s2 + $0x10] sm:$0xf]
        %v823 = vld [vmem:[%s2 + $0x14] sm:$0xf]
        %v824 = vld [vmem:[%s2 + $0x18] sm:$0xf]
        %v825 = vld [vmem:[%s2 + $0x1c] sm:$0xf]
        %v826 = vld [vmem:[%s2 + $0x20] sm:$0xf]
        %v827 = vld [vmem:[%s2 + $0x24] sm:$0xf]
        %v828 = vld [vmem:[%s2 + $0x28] sm:$0xf]
        %v829 = vld [vmem:[%s2 + $0x2c] sm:$0xf]
        %v830 = vld [vmem:[%s2 + $0x30] sm:$0xf]
        %v831 = vld [vmem:[%s2 + $0x34] sm:$0xf]
        %v832 = vld [vmem:[%s2 + $0x38] sm:$0xf]
        %v833 = vld [vmem:[%s2 + $0x3c] sm:$0xf]
        %v834 = vld [vmem:[%s2 + $0x40] sm:$0xf]
        %v835 = vld [vmem:[%s2 + $0x44] sm:$0xf]
        %v836 = vld [vmem:[%s2 + $0x48] sm:$0xf]
        %v837 = vld [vmem:[%s2 + $0x4c] sm:$0xf]
        %v858 = vunpack.c.l.b16 %v818
        %v859 = vunpack.c.l.b16 %v819
        %v860 = vunpack.c.l.b16 %v820
        %v861 = vunpack.c.l.b16 %v821
        %v862 = vunpack.c.l.b16 %v822
        %v863 = vunpack.c.l.b16 %v823
        %v864 = vunpack.c.l.b16 %v824
        %v865 = vunpack.c.l.b16 %v825
        %v866 = vunpack.c.l.b16 %v826
        %v867 = vunpack.c.l.b16 %v827
        %v868 = vunpack.c.l.b16 %v828
        %v869 = vunpack.c.l.b16 %v829
        %v870 = vunpack.c.l.b16 %v830
        %v871 = vunpack.c.l.b16 %v831
        %v872 = vunpack.c.l.b16 %v832
        %v873 = vunpack.c.l.b16 %v833
        %v874 = vunpack.c.l.b16 %v834
        %v875 = vunpack.c.l.b16 %v835
        %v876 = vunpack.c.l.b16 %v836
        %v877 = vunpack.c.l.b16 %v837
        %v878 = vpack.c.b16 %v859, %v858
        %v879 = vpack.c.b16 %v861, %v860
        %v880 = vpack.c.b16 %v863, %v862
        %v881 = vpack.c.b16 %v865, %v864
        %v882 = vpack.c.b16 %v867, %v866
        %v883 = vpack.c.b16 %v869, %v868
        %v884 = vpack.c.b16 %v871, %v870
        %v885 = vpack.c.b16 %v873, %v872
        %v886 = vpack.c.b16 %v875, %v874
        %v887 = vpack.c.b16 %v877, %v876
        %v899 = vsel %vm367, %v803, 0
        %v902 = vsel %vm367, %v805, 0
        %v905 = vsel %vm367, %v807, 0
        %v908 = vsel %vm367, %v809, 0
        %v911 = vsel %vm367, %v811, 0
        %v914 = vsel %vm367, %v813, 0
        %v917 = vsel %vm367, %v815, 0
        %v920 = vsel %vm367, %v817, 0
        %922 = vmatprep.subr.bf16.mxu0 0
        %923 = vmatpush1.bf16.msra.mxu0 %v878
        %924 = vmatprep.subr.bf16.mxu0 0
        %925 = vmatpush1.bf16.msra.mxu0 %v879
        %926 = vmatprep.subr.bf16.mxu0 0
        %927 = vmatpush1.bf16.msra.mxu0 %v880
        %928 = vmatprep.subr.bf16.mxu0 0
        %929 = vmatpush1.bf16.msra.mxu0 %v881
        %930 = vmatprep.subr.bf16.mxu0 0
        %931 = vmatpush1.bf16.msra.mxu0 %v882
        %932 = vmatprep.subr.bf16.mxu0 0
        %933 = vmatpush1.bf16.msra.mxu0 %v883
        %934 = vmatprep.subr.bf16.mxu0 0
        %935 = vmatpush1.bf16.msra.mxu0 %v884
        %936 = vmatprep.subr.bf16.mxu0 0
        %937 = vmatpush1.bf16.msra.mxu0 %v885
        %938 = vmatprep.subr.bf16.mxu0 0
        %939 = vmatpush1.bf16.msra.mxu0 %v886
        %940 = vmatprep.subr.bf16.mxu0 0
        %941 = vmatpush1.bf16.msra.mxu0 %v887
        %942 = vmatprep.subr.bf16.mxu0 0
        %943 = vmatpush1.bf16.msra.mxu0 0
        %944 = vmatprep.subr.bf16.mxu0 0
        %945 = vmatpush1.bf16.msra.mxu0 0
        %946 = vmatprep.subr.bf16.mxu0 0
        %947 = vmatpush1.bf16.msra.mxu0 0
        %948 = vmatprep.subr.bf16.mxu0 0
        %949 = vmatpush1.bf16.msra.mxu0 0
        %950 = vmatprep.subr.bf16.mxu0 0
        %951 = vmatpush1.bf16.msra.mxu0 0
        %952 = vmatprep.subr.bf16.mxu0 0
        %953 = vmatpush1.bf16.msra.mxu0 0
        %954 = vmatprep.mubr.bf16.mxu0 %v899
        %955 = vmatmul.mubr.bf16.gmra.mrb[0].mxu0 %v802
        %v956 = vpop.f32.mrb[0].mxu0
        %v957 = vadd.f32 0.0, %v956
        %v958 = vpop.f32.mrb[0].mxu0
        %v959 = vpop.f32.mrb[0].mxu0
        %v960 = vadd.f32 0.0, %v959
        %v961 = vpop.f32.mrb[0].mxu0
        %962 = vmatprep.mubr.bf16.mxu0 %v902
        %963 = vmatmul.mubr.bf16.gmra.mrb[0].mxu0 %v804
        %v964 = vpop.f32.mrb[0].mxu0
        %v965 = vadd.f32 0.0, %v964
        %v966 = vpop.f32.mrb[0].mxu0
        %v967 = vpop.f32.mrb[0].mxu0
        %v968 = vadd.f32 0.0, %v967
        %v969 = vpop.f32.mrb[0].mxu0
        %970 = vmatprep.mubr.bf16.mxu0 %v905
        %971 = vmatmul.mubr.bf16.gmra.mrb[0].mxu0 %v806
        %v972 = vpop.f32.mrb[0].mxu0
        %v973 = vadd.f32 0.0, %v972
        %v974 = vpop.f32.mrb[0].mxu0
        %v975 = vpop.f32.mrb[0].mxu0
        %v976 = vadd.f32 0.0, %v975
        %v977 = vpop.f32.mrb[0].mxu0
        %978 = vmatprep.mubr.bf16.mxu0 %v908
        %979 = vmatmul.mubr.bf16.gmra.mrb[0].mxu0 %v808
        %v980 = vpop.f32.mrb[0].mxu0
        %v981 = vadd.f32 0.0, %v980
        %v982 = vpop.f32.mrb[0].mxu0
        %v983 = vpop.f32.mrb[0].mxu0
        %v984 = vadd.f32 0.0, %v983
        %v985 = vpop.f32.mrb[0].mxu0
        %986 = vmatprep.mubr.bf16.mxu0 %v911
        %987 = vmatmul.mubr.bf16.gmra.mrb[0].mxu0 %v810
        %v988 = vpop.f32.mrb[0].mxu0
        %v989 = vadd.f32 0.0, %v988
        %v990 = vpop.f32.mrb[0].mxu0
        %v991 = vpop.f32.mrb[0].mxu0
        %v992 = vadd.f32 0.0, %v991
        %v993 = vpop.f32.mrb[0].mxu0
        %994 = vmatprep.mubr.bf16.mxu0 %v914
        %995 = vmatmul.mubr.bf16.gmra.mrb[0].mxu0 %v812
        %v996 = vpop.f32.mrb[0].mxu0
        %v997 = vadd.f32 0.0, %v996
        %v998 = vpop.f32.mrb[0].mxu0
        %v999 = vpop.f32.mrb[0].mxu0
        %v1000 = vadd.f32 0.0, %v999
        %v1001 = vpop.f32.mrb[0].mxu0
        %1002 = vmatprep.mubr.bf16.mxu0 %v917
        %1003 = vmatmul.mubr.bf16.gmra.mrb[0].mxu0 %v814
        %v1004 = vpop.f32.mrb[0].mxu0
        %v1005 = vadd.f32 0.0, %v1004
        %v1006 = vpop.f32.mrb[0].mxu0
        %v1007 = vpop.f32.mrb[0].mxu0
        %v1008 = vadd.f32 0.0, %v1007
        %v1009 = vpop.f32.mrb[0].mxu0
        %1010 = vmatprep.mubr.bf16.mxu0 %v920
        %1011 = vmatmul.mubr.bf16.gmra.mrb[0].mxu0 %v816
        %v1012 = vpop.f32.mrb[0].mxu0
        %v1013 = vadd.f32 0.0, %v1012
        %v1014 = vpop.f32.mrb[0].mxu0
        %v1015 = vpop.f32.mrb[0].mxu0
        %v1016 = vadd.f32 0.0, %v1015
        %v1017 = vpop.f32.mrb[0].mxu0
        %1018 = vdwg.mxu0
        %v1019 = vld [vmem:[%s4] sm:$0xff]
        %v1020 = vadd.f32 %v960, %v1019
        %v1021 = vadd.f32 %v968, %v1019
        %v1022 = vadd.f32 %v976, %v1019
        %v1023 = vadd.f32 %v984, %v1019
        %v1024 = vadd.f32 %v992, %v1019
        %v1025 = vadd.f32 %v1000, %v1019
        %v1026 = vadd.f32 %v1008, %v1019
        %v1027 = vadd.f32 %v1016, %v1019
        %v1028 = vrot.slane %v1020, 4
        %v1029 = vmax.f32 %v1020, %v1028
        %v1030 = vrot.slane %v1029, 2
        %v1031 = vmax.f32 %v1029, %v1030
        %v1032 = vrot.slane %v1031, 1
        %v1033 = vmax.f32 %v1031, %v1032
        %v1034 = vrot.slane %v1021, 4
        %v1035 = vmax.f32 %v1021, %v1034
        %v1036 = vrot.slane %v1035, 2
        %v1037 = vmax.f32 %v1035, %v1036
        %v1038 = vrot.slane %v1037, 1
        %v1039 = vmax.f32 %v1037, %v1038
        %v1040 = vrot.slane %v1022, 4
        %v1041 = vmax.f32 %v1022, %v1040
        %v1042 = vrot.slane %v1041, 2
        %v1043 = vmax.f32 %v1041, %v1042
        %v1044 = vrot.slane %v1043, 1
        %v1045 = vmax.f32 %v1043, %v1044
        %v1046 = vrot.slane %v1023, 4
        %v1047 = vmax.f32 %v1023, %v1046
        %v1048 = vrot.slane %v1047, 2
        %v1049 = vmax.f32 %v1047, %v1048
        %v1050 = vrot.slane %v1049, 1
        %v1051 = vmax.f32 %v1049, %v1050
        %v1052 = vrot.slane %v1024, 4
        %v1053 = vmax.f32 %v1024, %v1052
        %v1054 = vrot.slane %v1053, 2
        %v1055 = vmax.f32 %v1053, %v1054
        %v1056 = vrot.slane %v1055, 1
        %v1057 = vmax.f32 %v1055, %v1056
        %v1058 = vrot.slane %v1025, 4
        %v1059 = vmax.f32 %v1025, %v1058
        %v1060 = vrot.slane %v1059, 2
        %v1061 = vmax.f32 %v1059, %v1060
        %v1062 = vrot.slane %v1061, 1
        %v1063 = vmax.f32 %v1061, %v1062
        %v1064 = vrot.slane %v1026, 4
        %v1065 = vmax.f32 %v1026, %v1064
        %v1066 = vrot.slane %v1065, 2
        %v1067 = vmax.f32 %v1065, %v1066
        %v1068 = vrot.slane %v1067, 1
        %v1069 = vmax.f32 %v1067, %v1068
        %v1070 = vrot.slane %v1027, 4
        %v1071 = vmax.f32 %v1027, %v1070
        %v1072 = vrot.slane %v1071, 2
        %v1073 = vmax.f32 %v1071, %v1072
        %v1074 = vrot.slane %v1073, 1
        %v1075 = vmax.f32 %v1073, %v1074
        %v1076 = vrot.slane %v957, 4
        %v1077 = vmax.f32 %v957, %v1076
        %v1078 = vrot.slane %v1077, 2
        %v1079 = vmax.f32 %v1077, %v1078
        %v1080 = vrot.slane %v1079, 1
        %v1081 = vmax.f32 %v1079, %v1080
        %v1082 = vrot.slane %v965, 4
        %v1083 = vmax.f32 %v965, %v1082
        %v1084 = vrot.slane %v1083, 2
        %v1085 = vmax.f32 %v1083, %v1084
        %v1086 = vrot.slane %v1085, 1
        %v1087 = vmax.f32 %v1085, %v1086
        %v1088 = vrot.slane %v973, 4
        %v1089 = vmax.f32 %v973, %v1088
        %v1090 = vrot.slane %v1089, 2
        %v1091 = vmax.f32 %v1089, %v1090
        %v1092 = vrot.slane %v1091, 1
        %v1093 = vmax.f32 %v1091, %v1092
        %v1094 = vrot.slane %v981, 4
        %v1095 = vmax.f32 %v981, %v1094
        %v1096 = vrot.slane %v1095, 2
        %v1097 = vmax.f32 %v1095, %v1096
        %v1098 = vrot.slane %v1097, 1
        %v1099 = vmax.f32 %v1097, %v1098
        %v1100 = vrot.slane %v989, 4
        %v1101 = vmax.f32 %v989, %v1100
        %v1102 = vrot.slane %v1101, 2
        %v1103 = vmax.f32 %v1101, %v1102
        %v1104 = vrot.slane %v1103, 1
        %v1105 = vmax.f32 %v1103, %v1104
        %v1106 = vrot.slane %v997, 4
        %v1107 = vmax.f32 %v997, %v1106
        %v1108 = vrot.slane %v1107, 2
        %v1109 = vmax.f32 %v1107, %v1108
        %v1110 = vrot.slane %v1109, 1
        %v1111 = vmax.f32 %v1109, %v1110
        %v1112 = vrot.slane %v1005, 4
        %v1113 = vmax.f32 %v1005, %v1112
        %v1114 = vrot.slane %v1113, 2
        %v1115 = vmax.f32 %v1113, %v1114
        %v1116 = vrot.slane %v1115, 1
        %v1117 = vmax.f32 %v1115, %v1116
        %v1118 = vrot.slane %v1013, 4
        %v1119 = vmax.f32 %v1013, %v1118
        %v1120 = vrot.slane %v1119, 2
        %v1121 = vmax.f32 %v1119, %v1120
        %v1122 = vrot.slane %v1121, 1
        %v1123 = vmax.f32 %v1121, %v1122
        %v1124 = vmax.f32 %v1033, %v1081
        %v1125 = vmax.f32 %v1039, %v1087
        %v1126 = vmax.f32 %v1045, %v1093
        %v1127 = vmax.f32 %v1051, %v1099
        %v1128 = vmax.f32 %v1057, %v1105
        %v1129 = vmax.f32 %v1063, %v1111
        %v1130 = vmax.f32 %v1069, %v1117
        %v1131 = vmax.f32 %v1075, %v1123
        %v1132 = vld [vmem:[%s3] sm:$0x1]
        %v1134 = vlaneseq
        %v1135 = vshrl.u32 %v1134, 7
        %v1136 = vsub.s32 0, %v1135
        %v1137 = vrot.slane %v1132, %v1136
        %v1139 = vadd.f32 %v1124, %v1137
        %v1140 = vadd.f32 %v1125, %v1137
        %v1141 = vadd.f32 %v1126, %v1137
        %v1142 = vadd.f32 %v1127, %v1137
        %v1143 = vadd.f32 %v1128, %v1137
        %v1144 = vadd.f32 %v1129, %v1137
        %v1145 = vadd.f32 %v1130, %v1137
        %v1146 = vadd.f32 %v1131, %v1137
        %v1147 = vmax.f32 %v1139, 0.0
        %v1148 = vmax.f32 %v1140, 0.0
        %v1149 = vmax.f32 %v1141, 0.0
        %v1150 = vmax.f32 %v1142, 0.0
        %v1151 = vmax.f32 %v1143, 0.0
        %v1152 = vmax.f32 %v1144, 0.0
        %v1153 = vmax.f32 %v1145, 0.0
        %v1154 = vmax.f32 %v1146, 0.0
        %v1163 = vrot.slane %v1148, 7
        %vm1164 = vcmask 1041409
        %v1165 = vsel %vm1164, %v1163, %v1147
        %v1166 = vrot.slane %v1149, 6
        %vm1167 = vcmask 1042434
        %v1168 = vsel %vm1167, %v1166, %v1165
        %v1169 = vrot.slane %v1150, 5
        %vm1170 = vcmask 1043459
        %v1171 = vsel %vm1170, %v1169, %v1168
        %v1172 = vrot.slane %v1151, 4
        %vm1173 = vcmask 1044484
        %v1174 = vsel %vm1173, %v1172, %v1171
        %v1175 = vrot.slane %v1152, 3
        %vm1176 = vcmask 1045509
        %v1177 = vsel %vm1176, %v1175, %v1174
        %v1178 = vrot.slane %v1153, 2
        %vm1179 = vcmask 1046534
        %v1180 = vsel %vm1179, %v1178, %v1177
        %v1181 = vrot.slane %v1154, 1
        %vm1182 = vcmask 1047559
        %v1183 = vsel %vm1182, %v1181, %v1180
        %1185 = vst [vmem:[%s220] sm:$0xff] %v1183
        %s1186 = sand.u32 %s137, 1
        %s1187 = scalar_lea.sflag [#allocation4], %s1186
        %s1188 = sand.u32 %s137, 1
        %s1189 = smul.addr %s1188, 8
        %s1190 = scalar_lea.vmem [#allocation3], %s1189
        // Predicated region
        $region41: #{tpu_custom_call.1} parent=39 // pred_check
          %p1191 = pneg %p147
        $region42: #{tpu_custom_call.1} parent=39 // pred_check_branch
          %1193 = sbr.rel (%p1191) target = $region44
        $region43: #{tpu_custom_call.1} parent=39 // pred_region
          %s1195 = ssub.s32 128, 128
          %1196 = vsyncadd %s1187, %s1195
          %s1197 = smul.addr %s19, 128
          %s1198 = scalar_lea.hbm %s5, %s1197
          %s1200 = sshll.u32 %s1190, 4
          %s1201 = int_to_ptr.vmem [resolvable:$true] %s1200
          %1203 = dma.vmem_to_hbm [thread:$0]  %s1201, 128, %s1198, %s1187
        $region44: #{tpu_custom_call.1} parent=39 // pred_fallthru
          _
      $region40: #{tpu_custom_call.1} parent=5 // pred_fallthru
        _
      %p1204 = scmp.le.s32.totalorder 2, %s14
      // Predicated region
      $region45: #{tpu_custom_call.1} parent=5 // pred_check
        %p1205 = pneg %p1204
      $region46: #{tpu_custom_call.1} parent=5 // pred_check_branch
        %1207 = sbr.rel (%p1205) target = $region48
      $region47: #{tpu_custom_call.1} parent=5 // pred_region
        %s1208 = ssub.s32 %s14, 2
        // Predicated region
        $region49: #{tpu_custom_call.1} parent=47 // pred_check
          %p1209 = pneg %p153
        $region50: #{tpu_custom_call.1} parent=47 // pred_check_branch
          %1211 = sbr.rel (%p1209) target = $region52
        $region51: #{tpu_custom_call.1} parent=47 // pred_region
          %s1212 = sand.u32 %s138, 1
          %s1213 = scalar_lea.sflag [#allocation4], %s1212
          %s1214 = sand.u32 %s138, 1
          %s1215 = smul.addr %s1214, 8
          %s1216 = scalar_lea.vmem [#allocation3], %s1215
          %1217 = dma.done %s1213, 128
        $region52: #{tpu_custom_call.1} parent=47 // pred_fallthru
          _
      $region48: #{tpu_custom_call.1} parent=5 // pred_fallthru
        _
    $region6: #{tpu_custom_call.1} parent=1 // loop_footer
      %s18 = sadd.s32 1, %s14
    $region7: #{tpu_custom_call.1} parent=1 // loop_footer_branch
      %13 = sbr.rel target = $region3
    $region8: #{tpu_custom_call.1} parent=1 // loop_exit
      _
    %1218 = vsyncpa [#allocation4], 1
    %s1219 = scalar_lea.sflag [#allocation4], 1
    %1220 = vsyncpa %s1219, 1

</llo_original>
